<compile_context>
chip_gen: v7x
topology: tpu7x:2x2x1
jax: 0.10.0
libtpu: 0.0.40
codegen_flags: <defaults>
</compile_context>

<pallas_src>
import functools

import jax
import jax.numpy as jnp
from jax import lax
from jax.experimental import pallas as pl
from jax.experimental.pallas import tpu as pltpu

_MIB = 1024 * 1024


def _round_up(x: int, m: int) -> int:
    return ((x + m - 1) // m) * m


def _min_sublane(dtype) -> int:
    # Minimum second-minor tile: 8 for 4-byte, 16 for 2-byte, 32 for 1-byte dtypes.
    return {4: 8, 2: 16, 1: 32}.get(jnp.dtype(dtype).itemsize, 8)


def _divisor_tiles(dim: int, multiple: int, max_tile: int):
    """Descending multiples of `multiple` that divide `dim` and are <= max_tile."""
    out = []
    t = multiple
    limit = min(dim, max_tile)
    while t <= limit:
        if dim % t == 0:
            out.append(t)
        t += multiple
    if not out:
        out.append(dim)
    return out[::-1]


def _vmem_capacity_bytes() -> int:
    try:
        cap = getattr(pltpu.get_tpu_info(), "vmem_capacity_bytes", None)
        if cap:
            return int(cap)
    except Exception:
        pass
    return 64 * _MIB  # conservative default (v7x per-TensorCore VMEM)


def _kernel_acc_in_out(x_ref, w_ref, b_ref, o_ref, *, mxu_dtype):
    """f32 output: accumulate directly into the K-resident output block."""
    k = pl.program_id(2)

    @pl.when(k == 0)
    def _init():
        # Bias added exactly once, as the accumulator init.
        o_ref[...] = jnp.broadcast_to(b_ref[...], o_ref.shape)

    # ReLU in the stored dtype on the VPU (v5e has no bf16 VPU), cast for MXU.
    w = jnp.maximum(w_ref[...], 0.0).astype(mxu_dtype)
    x = x_ref[...].astype(mxu_dtype)
    # Contract the shared IN (last) axis directly: (tm,tk) x (tn,tk) -> (tm,tn).
    o_ref[...] += lax.dot_general(
        x, w, dimension_numbers=(((1,), (1,)), ((), ())),
        preferred_element_type=jnp.float32)


def _kernel_scratch_acc(x_ref, w_ref, b_ref, o_ref, acc_ref, *, mxu_dtype):
    """Narrow output dtype: accumulate in f32 VMEM scratch, cast in the epilogue."""
    k = pl.program_id(2)

    @pl.when(k == 0)
    def _init():
        acc_ref[...] = jnp.broadcast_to(b_ref[...], acc_ref.shape)

    w = jnp.maximum(w_ref[...], 0.0).astype(mxu_dtype)
    x = x_ref[...].astype(mxu_dtype)
    acc_ref[...] += lax.dot_general(
        x, w, dimension_numbers=(((1,), (1,)), ((), ())),
        preferred_element_type=jnp.float32)

    @pl.when(k == pl.num_programs(2) - 1)
    def _finalize():
        o_ref[...] = acc_ref[...].astype(o_ref.dtype)


@functools.partial(
    jax.jit,
    static_argnames=("mxu_dtype", "force_pallas", "max_tm", "max_tn", "max_tk"))
def nonneg_linear(x, weight, bias=None, *, mxu_dtype=jnp.bfloat16,
                  force_pallas=False, max_tm=1024, max_tn=512, max_tk=2048):
    """Forward of NonNegLinear: x @ relu(weight).T + bias.

    x: (..., IN), weight: (OUT, IN), bias: (OUT,) or None -> (..., OUT).
    `mxu_dtype=jnp.bfloat16` feeds the MXU bf16 operands with f32 accumulation
    (fast path on v5e/v6e/v7x); pass jnp.float32 for bit-parity with the f32
    PyTorch reference.
    """
    *lead, IN = x.shape
    OUT, IN_w = weight.shape
    assert IN == IN_w, (IN, IN_w)
    out_dtype = x.dtype

    x2d = x.reshape(-1, IN)
    B = x2d.shape[0]

    bias_f32 = (jnp.zeros((OUT,), jnp.float32) if bias is None
                else bias.astype(jnp.float32))

    # Tiny problems: a plain XLA fusion beats pallas_call launch + pad/slice.
    if not force_pallas and B * IN * OUT < 64 * 128 * 128:
        y = jnp.dot(x2d.astype(mxu_dtype),
                    jnp.maximum(weight, 0.0).astype(mxu_dtype).T,
                    preferred_element_type=jnp.float32)
        return (y + bias_f32[None, :]).astype(out_dtype).reshape(*lead, OUT)

    xb = jnp.dtype(x.dtype).itemsize
    wb = jnp.dtype(weight.dtype).itemsize
    ob = jnp.dtype(out_dtype).itemsize
    sub = max(_min_sublane(x.dtype), _min_sublane(out_dtype))

    # Pad only to the hardware-minimum tile (relu(0)=0 and zero x/bias padding
    # contribute nothing), never up to tile multiples.
    Bp, OUTp, INp = _round_up(B, sub), _round_up(OUT, 128), _round_up(IN, 128)
    x_p = x2d if (Bp == B and INp == IN) else jnp.pad(
        x2d, ((0, Bp - B), (0, INp - IN)))
    w_p = weight if (OUTp == OUT and INp == IN) else jnp.pad(
        weight, ((0, OUTp - OUT), (0, INp - IN)))
    b_p = (bias_f32 if OUTp == OUT else jnp.pad(
        bias_f32, (0, OUTp - OUT))).reshape(1, OUTp)

    # Tile choice: cover the whole padded batch with one M tile when possible so
    # the weight streams from HBM exactly once; largest divisor tiles for N/K to
    # amortise per-grid-step overhead.
    cand_m = _divisor_tiles(Bp, sub, max_tm)
    cand_n = _divisor_tiles(OUTp, 128, max_tn)
    cand_k = _divisor_tiles(INp, 128, max_tk)

    use_scratch = out_dtype != jnp.float32

    def working_set(tm, tn, tk):  # double-buffered in/out blocks + scratch
        ws = 2 * (tm * tk * xb + tn * tk * wb + tn * 4 + tm * tn * ob)
        return ws + (tm * tn * 4 if use_scratch else 0)

    cap = _vmem_capacity_bytes()
    tile_budget = min(48 * _MIB, cap // 2)  # keep well inside v7x's 64 MiB VMEM

    mi = ni = ki = 0
    while working_set(cand_m[mi], cand_n[ni], cand_k[ki]) > tile_budget:
        if ki + 1 < len(cand_k):
            ki += 1
        elif ni + 1 < len(cand_n):
            ni += 1
        elif mi + 1 < len(cand_m):
            mi += 1
        else:
            break
    tm, tn, tk = cand_m[mi], cand_n[ni], cand_k[ki]

    # Ensure the "parallel" M/N grid has >= 2 tiles so both v7x TensorCores get
    # work (one extra tile is essentially free on single-TC v5e/v6e).
    if Bp // tm == 1 and OUTp // tn == 1:
        n_alt = [t for t in cand_n if t <= tn // 2]
        m_alt = [t for t in cand_m if t <= tm // 2]
        if n_alt:
            tn = n_alt[0]
        elif m_alt:
            tm = m_alt[0]

    grid = (Bp // tm, OUTp // tn, INp // tk)

    kernel = functools.partial(
        _kernel_scratch_acc if use_scratch else _kernel_acc_in_out,
        mxu_dtype=mxu_dtype)
    scratch = ((pltpu.VMEM((tm, tn), jnp.float32),) if use_scratch else ())

    ws_val = working_set(tm, tn, tk)
    vmem_limit = int(min(cap * 3 // 4, max(2 * ws_val, 32 * _MIB)))
    vmem_limit = max(vmem_limit, ws_val + 2 * _MIB)

    cost = pl.CostEstimate(
        flops=2 * B * OUT * IN,
        transcendentals=0,
        bytes_accessed=xb * B * IN + wb * OUT * IN + 4 * OUT + ob * B * OUT)

    out_p = pl.pallas_call(
        kernel,
        out_shape=jax.ShapeDtypeStruct((Bp, OUTp), out_dtype),
        grid_spec=pltpu.PrefetchScalarGridSpec(
            num_scalar_prefetch=0,
            grid=grid,
            in_specs=[
                pl.BlockSpec((tm, tk), lambda i, j, k: (i, k)),   # x tile
                pl.BlockSpec((tn, tk), lambda i, j, k: (j, k)),   # weight tile
                pl.BlockSpec((1, tn), lambda i, j, k: (0, j)),    # bias (K-invariant)
            ],
            out_specs=pl.BlockSpec((tm, tn), lambda i, j, k: (i, j)),
            scratch_shapes=scratch,
        ),
        compiler_params=pltpu.CompilerParams(
            # M and N shard across TensorCores on v7x; K is the reduction axis.
            dimension_semantics=("parallel", "parallel", "arbitrary"),
            vmem_limit_bytes=vmem_limit,
        ),
        cost_estimate=cost,
        # TODO(synk): if profiling shows exposed DMA with grid_M == 1, deepen the
        # weight stream with pipeline_mode=pl.Buffered(3) on its BlockSpec.
    )(x_p, w_p, b_p)

    if (Bp, OUTp) != (B, OUT):
        out_p = out_p[:B, :OUT]
    return out_p.reshape(*lead, OUT)


if __name__ == "__main__":
    key = jax.random.PRNGKey(0)
    k_x, k_w, k_b, k_x2, k_w2, k_b2 = jax.random.split(key, 6)

    # ---- Test 1: module-like small shape, exact f32 path forced through the kernel.
    batch, in_features, out_features = 8, 32, 16
    x = jax.random.normal(k_x, (batch, in_features), dtype=jnp.float32)
    weight = jax.random.normal(k_w, (out_features, in_features), dtype=jnp.float32)
    bias = jax.random.normal(k_b, (out_features,), dtype=jnp.float32)
    normalization_multiplier = jnp.ones((1,), jnp.float32)  # unused in forward()  # noqa: F841

    out = nonneg_linear(x, weight, bias, mxu_dtype=jnp.float32, force_pallas=True)
    out = jax.block_until_ready(out)
    ref = x @ jnp.maximum(weight, 0.0).T + bias
    assert out.shape == (batch, out_features)
    assert jnp.allclose(out, ref, atol=1e-5, rtol=1e-5), float(
        jnp.max(jnp.abs(out - ref)))

    # ---- Test 2: larger shape on the default bf16-operand MXU path (f32 accumulation).
    B2, IN2, OUT2 = 64, 320, 272
    x2 = jax.random.normal(k_x2, (B2, IN2), dtype=jnp.float32)
    w2 = jax.random.normal(k_w2, (OUT2, IN2), dtype=jnp.float32)
    b2 = jax.random.normal(k_b2, (OUT2,), dtype=jnp.float32)

    out2 = jax.block_until_ready(nonneg_linear(x2, w2, b2))
    ref2_f32 = x2 @ jnp.maximum(w2, 0.0).T + b2
    ref2_bf16 = jnp.dot(x2.astype(jnp.bfloat16),
                        jnp.maximum(w2, 0.0).astype(jnp.bfloat16).T,
                        preferred_element_type=jnp.float32) + b2
    assert out2.shape == (B2, OUT2)
    # Same bf16-operand / f32-accumulate computation -> tight agreement.
    assert jnp.allclose(out2, ref2_bf16, atol=1e-2, rtol=1e-2)
    # vs full-f32 reference only bf16 operand rounding differs.
    assert jnp.allclose(out2, ref2_f32, atol=0.5, rtol=5e-2)

    print("KERNEL_OK")
</pallas_src>

<mosaic_0001>
module attributes {stable_mosaic.version = 11 : i64} {
  func.func @_kernel_acc_in_out(%arg0: i32, %arg1: i32, %arg2: i32, %arg3: memref<8x128xf32, #tpu.memory_space<vmem>>, %arg4: memref<128x128xf32, #tpu.memory_space<vmem>>, %arg5: memref<1x128xf32, #tpu.memory_space<vmem>>, %arg6: memref<8x128xf32, #tpu.memory_space<vmem>>) attributes {dimension_semantics = [#tpu.dimension_semantics<parallel>, #tpu.dimension_semantics<parallel>, #tpu.dimension_semantics<arbitrary>], iteration_bounds = array<i64: 1, 1, 1>, scalar_prefetch = 0 : i64, scratch_operands = 0 : i64, tpu.core_type = #tpu.core_type<tc>, window_params = [{transform_indices = @transform_0, window_bounds = array<i64: 8, 128>}, {transform_indices = @transform_1, window_bounds = array<i64: 128, 128>}, {transform_indices = @transform_2, window_bounds = array<i64: 1, 128>}, {transform_indices = @transform_3, window_bounds = array<i64: 8, 128>}]} {
    %c0_i32 = arith.constant 0 : i32
    %0 = arith.cmpi eq, %arg2, %c0_i32 : i32
    %1 = arith.extui %0 : i1 to i32
    %c0_i32_0 = arith.constant 0 : i32
    %2 = arith.cmpi ne, %1, %c0_i32_0 : i32
    scf.if %2 {
      %c0_9 = arith.constant 0 : index
      %c0_10 = arith.constant 0 : index
      %11 = vector.load %arg5[%c0_9, %c0_10] : memref<1x128xf32, #tpu.memory_space<vmem>>, vector<1x128xf32>
      %12 = vector.shape_cast %11 : vector<1x128xf32> to vector<1x128xf32>
      %13 = vector.broadcast %12 : vector<1x128xf32> to vector<8x128xf32>
      %c0_11 = arith.constant 0 : index
      %c0_12 = arith.constant 0 : index
      %14 = vector.load %arg6[%c0_11, %c0_12] : memref<8x128xf32, #tpu.memory_space<vmem>>, vector<8x128xf32>
      tpu.vector_store %arg6[%c0_11, %c0_12], %13 {strides = array<i32>} : memref<8x128xf32, #tpu.memory_space<vmem>>, vector<8x128xf32>,
    } else {
    }
    %c0 = arith.constant 0 : index
    %c0_1 = arith.constant 0 : index
    %3 = vector.load %arg4[%c0, %c0_1] : memref<128x128xf32, #tpu.memory_space<vmem>>, vector<128x128xf32>
    %cst = arith.constant 0.000000e+00 : f32
    %4 = vector.broadcast %cst : f32 to vector<128x128xf32>
    %5 = arith.maximumf %3, %4 : vector<128x128xf32>
    %c0_2 = arith.constant 0 : index
    %c0_3 = arith.constant 0 : index
    %6 = vector.load %arg3[%c0_2, %c0_3] : memref<8x128xf32, #tpu.memory_space<vmem>>, vector<8x128xf32>
    %c0_4 = arith.constant 0 : index
    %c0_5 = arith.constant 0 : index
    %7 = vector.load %arg6[%c0_4, %c0_5] : memref<8x128xf32, #tpu.memory_space<vmem>>, vector<8x128xf32>
    %cst_6 = arith.constant dense<0.000000e+00> : vector<8x128xf32>
    %8 = tpu.matmul %6, %5, %cst_6 {dimension_numbers = #tpu.dot_dimension_numbers<[1], [1], [0], [0], [0, 0, 1, 0], [], []>} : vector<8x128xf32>, vector<128x128xf32>, vector<8x128xf32> -> vector<8x128xf32>
    %9 = arith.addf %7, %8 : vector<8x128xf32>
    %c0_7 = arith.constant 0 : index
    %c0_8 = arith.constant 0 : index
    %10 = vector.load %arg6[%c0_7, %c0_8] : memref<8x128xf32, #tpu.memory_space<vmem>>, vector<8x128xf32>
    tpu.vector_store %arg6[%c0_7, %c0_8], %9 {strides = array<i32>} : memref<8x128xf32, #tpu.memory_space<vmem>>, vector<8x128xf32>,
    return
  }
  func.func @transform_0(%arg0: i32, %arg1: i32, %arg2: i32) -> (i32, i32) {
    %c0_i32 = arith.constant 0 : i32
    return %arg0, %arg2 : i32, i32
  }
  func.func @transform_1(%arg0: i32, %arg1: i32, %arg2: i32) -> (i32, i32) {
    %c0_i32 = arith.constant 0 : i32
    return %arg1, %arg2 : i32, i32
  }
  func.func @transform_2(%arg0: i32, %arg1: i32, %arg2: i32) -> (i32, i32) {
    %c0_i32 = arith.constant 0 : i32
    %c0_i32_0 = arith.constant 0 : i32
    return %c0_i32, %arg1 : i32, i32
  }
  func.func @transform_3(%arg0: i32, %arg1: i32, %arg2: i32) -> (i32, i32) {
    %c0_i32 = arith.constant 0 : i32
    return %arg0, %arg1 : i32, i32
  }
}

</mosaic_0001>

<llo_original>
// kernel: nonneg_linear.1
$region0: #{nonneg_linear.1}
  #allocation0 [shape = 'u32[]', space=smem, size = 0x4, offset = 0x4, fixed_abs, tag = 'smem constant byte address 0x4 - core index']
  #allocation1 [shape = 'u32[144,128]{1,0:T(1,128)}', space=vmem, size = 0x12000, scoped, tag = 'internal scratch']
  %s0 = inlined_call_operand.vmem [shape: f32[8,128], index: 0, kind: input, shape index: {}]
  %s1 = inlined_call_operand.vmem [shape: f32[128,128], index: 1, kind: input, shape index: {}]
  %s2 = inlined_call_operand.vmem [shape: f32[1,128], index: 2, kind: input, shape index: {}]
  %s3 = inlined_call_operand.hbm [shape: f32[8,128], index: 3, kind: output, shape index: {}]
  %s4 = sld [smem:[#allocation0]]
  $region26: #{nonneg_linear.1} parent=0
    _
  %s6 = ssub.s32 1, %s4
  %s7 = scalar_select 0, %s6, %s4
  $region1: #{nonneg_linear.1} parent=0
    #allocation2 [shape = 'u8[4096]{0}', space=vmem, size = 0x1000, scoped, tag = 'output window, operand 0, single buffered']
    #allocation3 [shape = 's32[1]{0}', space=sflag, size = 0x4, scoped, tag = 'scoped memory for nonneg_linear.1']
    %8 = vsyncpa [#allocation3], 0
    // Predicated region
    $region2: #{nonneg_linear.1} parent=1 // pred_check
      _
    $region3: #{nonneg_linear.1} parent=1 // pred_check_branch
      %10 = sbr.rel (0) target = $region5
    $region4: #{nonneg_linear.1} parent=1 // pred_region
      _
    $region5: #{nonneg_linear.1} parent=1 // pred_fallthru
      _
    // Predicated region
    $region6: #{nonneg_linear.1} parent=1 // pred_check
      _
    $region7: #{nonneg_linear.1} parent=1 // pred_check_branch
      %12 = sbr.rel (0) target = $region9
    $region8: #{nonneg_linear.1} parent=1 // pred_region
      _
    $region9: #{nonneg_linear.1} parent=1 // pred_fallthru
      _
    // Predicated region
    $region10: #{nonneg_linear.1} parent=1 // pred_check
      _
    $region11: #{nonneg_linear.1} parent=1 // pred_check_branch
      %14 = sbr.rel (0) target = $region13
    $region12: #{nonneg_linear.1} parent=1 // pred_region
      _
    $region13: #{nonneg_linear.1} parent=1 // pred_fallthru
      _
    %p15 = scmp.eq.s32.totalorder 0, 0
    // Predicated region
    $region14: #{nonneg_linear.1} parent=1 // pred_check
      %p16 = pneg %p15
    $region15: #{nonneg_linear.1} parent=1 // pred_check_branch
      %18 = sbr.rel (%p16) target = $region17
    $region16: #{nonneg_linear.1} parent=1 // pred_region
      %v19 = vld [vmem:[%s2] sm:$0x1]
      %v21 = vlaneseq
      %v22 = vshrl.u32 %v21, 7
      %v23 = vsub.s32 0, %v22
      %v24 = vrot.slane %v19, %v23
      %26 = vst [vmem:[#allocation2] sm:$0xff] %v24
    $region17: #{nonneg_linear.1} parent=1 // pred_fallthru
      _
    %v27 = vld [vmem:[%s1] sm:$0xff]
    %v28 = vld [vmem:[%s1 + $0x8] sm:$0xff]
    %v29 = vld [vmem:[%s1 + $0x10] sm:$0xff]
    %v30 = vld [vmem:[%s1 + $0x18] sm:$0xff]
    %v31 = vld [vmem:[%s1 + $0x20] sm:$0xff]
    %v32 = vld [vmem:[%s1 + $0x28] sm:$0xff]
    %v33 = vld [vmem:[%s1 + $0x30] sm:$0xff]
    %v34 = vld [vmem:[%s1 + $0x38] sm:$0xff]
    %v35 = vld [vmem:[%s1 + $0x40] sm:$0xff]
    %v36 = vld [vmem:[%s1 + $0x48] sm:$0xff]
    %v37 = vld [vmem:[%s1 + $0x50] sm:$0xff]
    %v38 = vld [vmem:[%s1 + $0x58] sm:$0xff]
    %v39 = vld [vmem:[%s1 + $0x60] sm:$0xff]
    %v40 = vld [vmem:[%s1 + $0x68] sm:$0xff]
    %v41 = vld [vmem:[%s1 + $0x70] sm:$0xff]
    %v42 = vld [vmem:[%s1 + $0x78] sm:$0xff]
    %v43 = vmax.f32 %v27, 0.0
    %v44 = vmax.f32 %v28, 0.0
    %v45 = vmax.f32 %v29, 0.0
    %v46 = vmax.f32 %v30, 0.0
    %v47 = vmax.f32 %v31, 0.0
    %v48 = vmax.f32 %v32, 0.0
    %v49 = vmax.f32 %v33, 0.0
    %v50 = vmax.f32 %v34, 0.0
    %v51 = vmax.f32 %v35, 0.0
    %v52 = vmax.f32 %v36, 0.0
    %v53 = vmax.f32 %v37, 0.0
    %v54 = vmax.f32 %v38, 0.0
    %v55 = vmax.f32 %v39, 0.0
    %v56 = vmax.f32 %v40, 0.0
    %v57 = vmax.f32 %v41, 0.0
    %v58 = vmax.f32 %v42, 0.0
    %v59 = vld [vmem:[%s0] sm:$0xff]
    %v60 = vld [vmem:[#allocation2] sm:$0xff]
    %61 = vmatprep.subr.mxu0 0.0
    %62 = vmatpush1.xpose.msra.mxu0 %v43
    %63 = vmatprep.subr.mxu0 0.0
    %64 = vmatpush1.xpose.msra.mxu0 %v44
    %65 = vmatprep.subr.mxu0 0.0
    %66 = vmatpush1.xpose.msra.mxu0 %v45
    %67 = vmatprep.subr.mxu0 0.0
    %68 = vmatpush1.xpose.msra.mxu0 %v46
    %69 = vmatprep.subr.mxu0 0.0
    %70 = vmatpush1.xpose.msra.mxu0 %v47
    %71 = vmatprep.subr.mxu0 0.0
    %72 = vmatpush1.xpose.msra.mxu0 %v48
    %73 = vmatprep.subr.mxu0 0.0
    %74 = vmatpush1.xpose.msra.mxu0 %v49
    %75 = vmatprep.subr.mxu0 0.0
    %76 = vmatpush1.xpose.msra.mxu0 %v50
    %77 = vmatprep.subr.mxu0 0.0
    %78 = vmatpush1.xpose.msra.mxu0 %v51
    %79 = vmatprep.subr.mxu0 0.0
    %80 = vmatpush1.xpose.msra.mxu0 %v52
    %81 = vmatprep.subr.mxu0 0.0
    %82 = vmatpush1.xpose.msra.mxu0 %v53
    %83 = vmatprep.subr.mxu0 0.0
    %84 = vmatpush1.xpose.msra.mxu0 %v54
    %85 = vmatprep.subr.mxu0 0.0
    %86 = vmatpush1.xpose.msra.mxu0 %v55
    %87 = vmatprep.subr.mxu0 0.0
    %88 = vmatpush1.xpose.msra.mxu0 %v56
    %89 = vmatprep.subr.mxu0 0.0
    %90 = vmatpush1.xpose.msra.mxu0 %v57
    %91 = vmatprep.subr.mxu0 0.0
    %92 = vmatpush1.xpose.msra.mxu0 %v58
    %93 = vmatprep.subr.mxu0 0.0
    %94 = vmatpush1.xpose.msra.mxu0 0.0
    %95 = vmatprep.subr.mxu0 0.0
    %96 = vmatpush1.xpose.msra.mxu0 0.0
    %97 = vmatprep.subr.mxu0 0.0
    %98 = vmatpush1.xpose.msra.mxu0 0.0
    %99 = vmatprep.subr.mxu0 0.0
    %100 = vmatpush1.xpose.msra.mxu0 0.0
    %101 = vmatprep.subr.mxu0 0.0
    %102 = vmatpush1.xpose.msra.mxu0 0.0
    %103 = vmatprep.subr.mxu0 0.0
    %104 = vmatpush1.xpose.msra.mxu0 0.0
    %105 = vmatprep.subr.mxu0 0.0
    %106 = vmatpush1.xpose.msra.mxu0 0.0
    %107 = vmatprep.subr.mxu0 0.0
    %108 = vmatpush1.xpose.msra.mxu0 0.0
    %109 = vmatprep.subr.mxu0 0.0
    %110 = vmatpush1.xpose.msra.mxu0 0.0
    %111 = vmatprep.subr.mxu0 0.0
    %112 = vmatpush1.xpose.msra.mxu0 0.0
    %113 = vmatprep.subr.mxu0 0.0
    %114 = vmatpush1.xpose.msra.mxu0 0.0
    %115 = vmatprep.subr.mxu0 0.0
    %116 = vmatpush1.xpose.msra.mxu0 0.0
    %117 = vmatprep.subr.mxu0 0.0
    %118 = vmatpush1.xpose.msra.mxu0 0.0
    %119 = vmatprep.subr.mxu0 0.0
    %120 = vmatpush1.xpose.msra.mxu0 0.0
    %121 = vmatprep.subr.mxu0 0.0
    %122 = vmatpush1.xpose.msra.mxu0 0.0
    %123 = vmatprep.subr.mxu0 0.0
    %124 = vmatpush1.xpose.msra.mxu0 0.0
    %125 = vmatprep.mubr.f32.mxu0 0.0
    %126 = vmatmul.mubr.f32.gmra.mrb[0].mxu0 %v59
    %v127 = vpop.f32.mrb[0].mxu0
    %v128 = vadd.f32 0.0, %v127
    %v129 = vpop.f32.mrb[0].mxu0
    %130 = vdwg.mxu0
    %v131 = vadd.f32 %v60, %v128
    %132 = vst [vmem:[#allocation2] sm:$0xff] %v131
    // Predicated region
    $region18: #{nonneg_linear.1} parent=1 // pred_check
      _
    $region19: #{nonneg_linear.1} parent=1 // pred_check_branch
      %134 = sbr.rel (0) target = $region21
    $region20: #{nonneg_linear.1} parent=1 // pred_region
      %s136 = ssub.s32 128, 128
      %137 = vsyncadd [#allocation3], %s136
      %s139 = sshll.u32 [#allocation2], 4
      %s140 = int_to_ptr.vmem [resolvable:$true] %s139
      %142 = dma.vmem_to_hbm [thread:$0]  %s140, 128, %s3, [#allocation3]
    $region21: #{nonneg_linear.1} parent=1 // pred_fallthru
      _
    // Predicated region
    $region22: #{nonneg_linear.1} parent=1 // pred_check
      _
    $region23: #{nonneg_linear.1} parent=1 // pred_check_branch
      %144 = sbr.rel (0) target = $region25
    $region24: #{nonneg_linear.1} parent=1 // pred_region
      %145 = dma.done [#allocation3], 128
    $region25: #{nonneg_linear.1} parent=1 // pred_fallthru
      _
    %146 = vsyncpa [#allocation3], 1

</llo_original>
